<compile_context>
chip_gen: v6e
topology: v6e:2x2x1
jax: 0.10.0
libtpu: 0.0.40
codegen_flags: <defaults>
</compile_context>

<pallas_src>
import jax
import jax.numpy as jnp
from jax import lax
from jax.experimental import pallas as pl
from jax.experimental.pallas import tpu as pltpu


def _round_up(x, m):
    return ((x + m - 1) // m) * m


def _pick_chunk(t, max_chunk=64):
    """Largest divisor of t that is <= max_chunk (bounds VMEM growth with T)."""
    best = 1
    for d in range(1, min(t, max_chunk) + 1):
        if t % d == 0:
            best = d
    return best


def rnn_fused_kernel(x_hbm_ref, wih_ref, whh_ref, b_ref, fcw_ref, fcb_ref,
                     out_ref, h_ref, xp_ref):
    """Whole forward pass in one kernel invocation (no outer grid).

    x_hbm_ref: (T*B_pad, E)       f32, time-major embedded tokens, stays in HBM
    wih_ref:   (E, H_pad)         bf16 input->hidden weight (transposed, zero-pad)
    whh_ref:   (H_pad, H_pad)     bf16 hidden->hidden weight (transposed, zero-pad)
    b_ref:     (1, H_pad)         f32  combined bias b_ih + b_hh (zero-pad)
    fcw_ref:   (H_pad, 128)       bf16 final linear weight; only column 0 real
    fcb_ref:   (1, 128)           f32  final linear bias;   only column 0 real
    out_ref:   (B_pad, 128)       f32  lane-dense output tile; logits in column 0
    h_ref:     (B_pad, H_pad)     f32  scratch: carried hidden state
    xp_ref:    (CH*B_pad, H_pad)  f32  scratch: per-chunk input projections
    """
    b_pad = out_ref.shape[0]
    e_dim = x_hbm_ref.shape[1]
    chunk_rows = xp_ref.shape[0]
    chunk_t = chunk_rows // b_pad
    n_chunks = x_hbm_ref.shape[0] // chunk_rows

    h_ref[...] = jnp.zeros_like(h_ref)

    # Hoist W_hh into vregs only when it is small enough (<=128 lanes wide,
    # i.e. 16 bf16 vregs); for H_pad > 128 read the VMEM ref inside the step
    # to avoid spilling the whole register file inside the unrolled loop.
    # TODO(synk): keep W_hh staged in the MXU across steps via
    # pltpu.matmul_push_rhs / matmul_acc_lhs / matmul_pop once validated.
    hoist_whh = whh_ref.shape[0] <= 128
    w_hh_hoisted = whh_ref[...] if hoist_whh else None

    unroll = min(chunk_t, 8)

    def chunk_body(x_ref):
        # Phase 1 (per chunk): batched input projection for all chunk timesteps
        # in one MXU matmul, bias folded in. Independent of the recurrence, so
        # it (and the chunk DMA) hides under the latency-bound serial loop.
        xp_ref[...] = (
            jnp.dot(x_ref[...].astype(jnp.bfloat16), wih_ref[...],
                    preferred_element_type=jnp.float32)
            + b_ref[...]
        )

        w_hh = w_hh_hoisted if hoist_whh else whh_ref[...]

        # Phase 2: serial recurrence — only h @ W_hh + tanh on the critical path.
        def step(t, h):
            row = pl.multiple_of(t * b_pad, b_pad)      # sublane-aligned slice
            x_t = xp_ref[pl.ds(row, b_pad), :]          # (B_pad, H_pad) f32
            return jnp.tanh(
                x_t + jnp.dot(h.astype(jnp.bfloat16), w_hh,
                              preferred_element_type=jnp.float32)
            )

        h_ref[...] = lax.fori_loop(0, chunk_t, step, h_ref[...], unroll=unroll)

    # Stream the time axis in chunks from HBM; VMEM usage is O(chunk), not O(T).
    pltpu.emit_pipeline(
        chunk_body,
        grid=(n_chunks,),
        in_specs=[pl.BlockSpec((chunk_rows, e_dim), lambda c: (c, 0))],
    )(x_hbm_ref)

    # Phase 3: final Linear, one lane-dense (B_pad, 128) unmasked store.
    out_ref[...] = (
        jnp.dot(h_ref[...].astype(jnp.bfloat16), fcw_ref[...],
                preferred_element_type=jnp.float32)
        + fcb_ref[...]
    ).astype(out_ref.dtype)


def rnn_forward(tokens, params):
    """tokens: int32 [B, T].  Returns float32 [B] (same as the PyTorch forward)."""
    embed_table = params["embedding"]          # [V, E]  (row 0 zero: padding_idx=0)
    w_ih = params["w_ih"]                      # [E, H]  (pre-transposed from torch [H,E])
    w_hh = params["w_hh"]                      # [H, H]  (pre-transposed)
    b = params["b"]                            # [1, H]  (b_ih + b_hh)
    fc_w = params["fc_w"]                      # [H, 1]  (pre-transposed from torch [1,H])
    fc_b = params["fc_b"]                      # [1, 1]

    B, T = tokens.shape
    E = embed_table.shape[1]
    H = w_hh.shape[0]

    B_pad = _round_up(max(B, 8), 8)            # sublane width
    H_pad = _round_up(max(H, 128), 128)        # lane width
    OUT_LANES = 128                            # output padded to one lane tile only
    chunk_t = _pick_chunk(T)                   # time chunk streamed through VMEM
    chunk_rows = chunk_t * B_pad

    # TODO(synk): move the embedding gather into the kernel (scalar-prefetched
    # tokens + DMA row gather from an HBM-resident table) to avoid materializing
    # the [T, B, E] embedded tensor in HBM.
    emb_tbe = jnp.take(embed_table, tokens.T, axis=0)              # [T, B, E]
    emb_tbe = jnp.pad(emb_tbe, ((0, 0), (0, B_pad - B), (0, 0)))   # [T, B_pad, E]
    x2d = emb_tbe.reshape(T * B_pad, E).astype(jnp.float32)

    # bf16 MXU feed for the weight matrices; biases / accumulators / tanh stay f32.
    w_ih_p = jnp.pad(w_ih, ((0, 0), (0, H_pad - H))).astype(jnp.bfloat16)
    w_hh_p = jnp.pad(w_hh, ((0, H_pad - H), (0, H_pad - H))).astype(jnp.bfloat16)
    b_p = jnp.pad(b, ((0, 0), (0, H_pad - H))).astype(jnp.float32)
    fc_w_p = jnp.pad(fc_w, ((0, H_pad - H), (0, OUT_LANES - 1))).astype(jnp.bfloat16)
    fc_b_p = jnp.pad(fc_b, ((0, 0), (0, OUT_LANES - 1))).astype(jnp.float32)

    # Scoped-VMEM limit sized from the actual buffers (+2x headroom).
    vmem_bytes = (
        2 * chunk_rows * E * 4                              # x chunk (double-buffered DMA)
        + chunk_rows * H_pad * 4                            # xp scratch
        + B_pad * H_pad * 4                                 # h scratch
        + (E * H_pad + H_pad * H_pad + H_pad * OUT_LANES) * 2   # bf16 weights
        + (H_pad + OUT_LANES) * 4                           # biases
        + B_pad * OUT_LANES * 4                             # output tile
    )
    vmem_limit = min(64 * 1024 * 1024, max(4 * 1024 * 1024, 2 * vmem_bytes))

    vmem = pltpu.MemorySpace.VMEM
    # TODO(synk): on v7x with B_pad >= 16, split the batch over the two
    # TensorCores (leading "parallel" grid axis or pl.core_map) for ~2x.
    out = pl.pallas_call(
        rnn_fused_kernel,
        out_shape=jax.ShapeDtypeStruct((B_pad, OUT_LANES), jnp.float32),
        in_specs=[
            pl.BlockSpec(memory_space=pl.ANY),   # x stays in HBM, chunk-DMA'd in-kernel
            pl.BlockSpec(memory_space=vmem),     # w_ih
            pl.BlockSpec(memory_space=vmem),     # w_hh
            pl.BlockSpec(memory_space=vmem),     # bias
            pl.BlockSpec(memory_space=vmem),     # fc_w
            pl.BlockSpec(memory_space=vmem),     # fc_b
        ],
        out_specs=pl.BlockSpec(memory_space=vmem),
        scratch_shapes=[
            pltpu.VMEM((B_pad, H_pad), jnp.float32),        # h carry
            pltpu.VMEM((chunk_rows, H_pad), jnp.float32),   # xp (per-chunk)
        ],
        compiler_params=pltpu.CompilerParams(vmem_limit_bytes=int(vmem_limit)),
    )(x2d, w_ih_p, w_hh_p, b_p, fc_w_p, fc_b_p)

    return out[:B, 0]   # logits, shape [B]  (== fc(output[:, -1, :]).squeeze(1))


def init_params(key, vocab_size, embed_dim, hidden_dim):
    k = jax.random.split(key, 7)
    embedding = 0.1 * jax.random.normal(k[0], (vocab_size, embed_dim), jnp.float32)
    embedding = embedding.at[0].set(0.0)  # padding_idx=0
    # torch stores weight_ih [H,E], weight_hh [H,H]; we keep them pre-transposed.
    w_ih = 0.1 * jax.random.normal(k[1], (embed_dim, hidden_dim), jnp.float32)
    w_hh = 0.1 * jax.random.normal(k[2], (hidden_dim, hidden_dim), jnp.float32)
    b_ih = 0.1 * jax.random.normal(k[3], (1, hidden_dim), jnp.float32)
    b_hh = 0.1 * jax.random.normal(k[4], (1, hidden_dim), jnp.float32)
    fc_w = 0.1 * jax.random.normal(k[5], (hidden_dim, 1), jnp.float32)
    fc_b = 0.1 * jax.random.normal(k[6], (1, 1), jnp.float32)
    return {
        "embedding": embedding,
        "w_ih": w_ih,
        "w_hh": w_hh,
        "b": b_ih + b_hh,
        "fc_w": fc_w,
        "fc_b": fc_b,
    }


def reference_forward(tokens, params):
    """Pure-JAX f32 reference mirroring torch semantics (sanity check)."""
    emb = jnp.take(params["embedding"], tokens, axis=0)  # [B,T,E]
    B, T, _ = emb.shape
    H = params["w_hh"].shape[0]
    h = jnp.zeros((B, H), jnp.float32)
    for t in range(T):
        h = jnp.tanh(emb[:, t, :] @ params["w_ih"] + h @ params["w_hh"] + params["b"])
    return (h @ params["fc_w"] + params["fc_b"])[:, 0]


if __name__ == "__main__":
    vocab_size, embed_dim, hidden_dim = 32, 16, 32
    B, T = 2, 8

    key = jax.random.PRNGKey(0)
    kp, kx = jax.random.split(key)
    params = init_params(kp, vocab_size, embed_dim, hidden_dim)
    tokens = jax.random.randint(kx, (B, T), 0, vocab_size, dtype=jnp.int32)

    fwd = jax.jit(rnn_forward)
    out = jax.block_until_ready(fwd(tokens, params))

    ref = reference_forward(tokens, params)
    assert out.shape == (B,)
    # bf16 MXU feed -> compare against the f32 reference at bf16-level tolerance.
    assert jnp.allclose(out, ref, atol=1e-2, rtol=1e-2), (out, ref)

    print("KERNEL_OK")
</pallas_src>

<mosaic_0001>
module attributes {stable_mosaic.version = 11 : i64} {
  func.func @rnn_fused_kernel(%arg0: memref<64x16xf32, #tpu.memory_space<any>>, %arg1: memref<16x128xbf16, #tpu.memory_space<vmem>>, %arg2: memref<128x128xbf16, #tpu.memory_space<vmem>>, %arg3: memref<1x128xf32, #tpu.memory_space<vmem>>, %arg4: memref<128x128xbf16, #tpu.memory_space<vmem>>, %arg5: memref<1x128xf32, #tpu.memory_space<vmem>>, %arg6: memref<8x128xf32, #tpu.memory_space<vmem>>, %arg7: memref<8x128xf32, #tpu.memory_space<vmem>>, %arg8: memref<64x128xf32, #tpu.memory_space<vmem>>) attributes {dimension_semantics = [], scalar_prefetch = 0 : i64, scratch_operands = 2 : i64, tpu.core_type = #tpu.core_type<tc>} {
    %cst = arith.constant 0.000000e+00 : f32
    %0 = vector.broadcast %cst : f32 to vector<8x128xf32>
    %c0 = arith.constant 0 : index
    %c0_0 = arith.constant 0 : index
    %1 = vector.load %arg7[%c0, %c0_0] : memref<8x128xf32, #tpu.memory_space<vmem>>, vector<8x128xf32>
    tpu.vector_store %arg7[%c0, %c0_0], %0 {strides = array<i32>} : memref<8x128xf32, #tpu.memory_space<vmem>>, vector<8x128xf32>,
    %c0_1 = arith.constant 0 : index
    %c0_2 = arith.constant 0 : index
    %2 = vector.load %arg2[%c0_1, %c0_2] : memref<128x128xbf16, #tpu.memory_space<vmem>>, vector<128x128xbf16>
    %c1_i32 = arith.constant 1 : i32
    %c1_i32_3 = arith.constant 1 : i32
    %3 = arith.muli %c1_i32, %c1_i32_3 : i32
    "tpu.region"() ({
      %alloca = memref.alloca() : memref<64x16xf32, #tpu.memory_space<vmem>>
      %c0_i32 = arith.constant 0 : i32
      %12 = arith.cmpi sgt, %3, %c0_i32 : i32
      %13 = arith.extui %12 : i1 to i32
      %c0_i32_13 = arith.constant 0 : i32
      %14 = arith.cmpi ne, %13, %c0_i32_13 : i32
      scf.if %14 {
        %c1_i32_14 = arith.constant 1 : i32
        %c1_i32_15 = arith.constant 1 : i32
        %15 = arith.muli %c1_i32_14, %c1_i32_15 : i32
        %c1_i32_16 = arith.constant 1 : i32
        %16 = arith.subi %15, %c1_i32_16 : i32
        %c0_i32_17 = arith.constant 0 : i32
        %17 = arith.cmpi eq, %16, %c0_i32_17 : i32
        %true = arith.constant true
        %c0_i32_18 = arith.constant 0 : i32
        %c-1_i32 = arith.constant -1 : i32
        %18 = arith.select %true, %c-1_i32, %c0_i32_18 : i32
        %c-1_i32_19 = arith.constant -1 : i32
        %19 = arith.cmpi eq, %18, %c-1_i32_19 : i32
        %c0_i32_20 = arith.constant 0 : i32
        %20 = arith.select %19, %c0_i32_20, %18 : i32
        %true_21 = arith.constant true
        %c0_i32_22 = arith.constant 0 : i32
        %c1_i32_23 = arith.constant 1 : i32
        %21 = arith.select %true_21, %c1_i32_23, %c0_i32_22 : i32
        %c1_i32_24 = arith.constant 1 : i32
        %22 = arith.cmpi eq, %21, %c1_i32_24 : i32
        %c0_i32_25 = arith.constant 0 : i32
        %23 = arith.select %22, %c0_i32_25, %21 : i32
        %true_26 = arith.constant true
        %c0_i32_27 = arith.constant 0 : i32
        %c1_i32_28 = arith.constant 1 : i32
        %24 = arith.select %true_26, %c1_i32_28, %c0_i32_27 : i32
        %c1_i32_29 = arith.constant 1 : i32
        %25 = arith.cmpi eq, %24, %c1_i32_29 : i32
        %c0_i32_30 = arith.constant 0 : i32
        %26 = arith.select %25, %c0_i32_30, %24 : i32
        "tpu.region"() ({
          %48 = tpu.sem_alloc : memref<!tpu.dma_semaphore, #tpu.memory_space<semaphore_mem>>
          tpu.enqueue_dma source(%arg0 : memref<64x16xf32, #tpu.memory_space<any>>) target(%alloca : memref<64x16xf32, #tpu.memory_space<vmem>>) target_semaphore(%48 : memref<!tpu.dma_semaphore, #tpu.memory_space<semaphore_mem>>)
          tpu.wait_dma2 semaphore(%48 : memref<!tpu.dma_semaphore, #tpu.memory_space<semaphore_mem>>) src(%arg0 : memref<64x16xf32, #tpu.memory_space<any>>) dst(%alloca : memref<64x16xf32, #tpu.memory_space<vmem>>)
          tpu.yield
        }) : () -> ()
        %c0_i32_31 = arith.constant 0 : i32
        %c0_i32_32 = arith.constant 0 : i32
        %c0_i32_33 = arith.constant 0 : i32
        %c0_i32_34 = arith.constant 0 : i32
        %27 = arith.subi %3, %c0_i32_32 : i32
        %28 = arith.addi %c0_i32_32, %27 : i32
        %c1_i32_35 = arith.constant 1 : i32
        %29:2 = scf.for %arg9 = %c0_i32_32 to %28 step %c1_i32_35 iter_args(%arg10 = %c0_i32_33, %arg11 = %c0_i32_34) -> (i32, i32)  : i32 {
          %c1_i32_60 = arith.constant 1 : i32
          %c1_i32_61 = arith.constant 1 : i32
          %48 = arith.muli %c1_i32_60, %c1_i32_61 : i32
          %c0_i32_62 = arith.constant 0 : i32
          %49 = arith.cmpi eq, %arg9, %c0_i32_62 : i32
          %c1_i32_63 = arith.constant 1 : i32
          %50 = arith.subi %48, %c1_i32_63 : i32
          %51 = arith.cmpi eq, %arg9, %50 : i32
          %true_64 = arith.constant true
          %c0_i32_65 = arith.constant 0 : i32
          %c-1_i32_66 = arith.constant -1 : i32
          %52 = arith.select %true_64, %c-1_i32_66, %c0_i32_65 : i32
          %c-1_i32_67 = arith.constant -1 : i32
          %53 = arith.cmpi eq, %52, %c-1_i32_67 : i32
          %c0_i32_68 = arith.constant 0 : i32
          %54 = arith.select %53, %c0_i32_68, %52 : i32
          %true_69 = arith.constant true
          %c0_i32_70 = arith.constant 0 : i32
          %c1_i32_71 = arith.constant 1 : i32
          %55 = arith.select %true_69, %c1_i32_71, %c0_i32_70 : i32
          %c1_i32_72 = arith.constant 1 : i32
          %56 = arith.cmpi eq, %55, %c1_i32_72 : i32
          %c0_i32_73 = arith.constant 0 : i32
          %57 = arith.select %56, %c0_i32_73, %55 : i32
          %true_74 = arith.constant true
          %c0_i32_75 = arith.constant 0 : i32
          %c1_i32_76 = arith.constant 1 : i32
          %58 = arith.select %true_74, %c1_i32_76, %c0_i32_75 : i32
          %c1_i32_77 = arith.constant 1 : i32
          %59 = arith.cmpi eq, %58, %c1_i32_77 : i32
          %c0_i32_78 = arith.constant 0 : i32
          %60 = arith.select %59, %c0_i32_78, %58 : i32
          "tpu.trace_start"() <{level = 10 : i32, message = "ep_run_kernel"}> : () -> ()
          %c0_79 = arith.constant 0 : index
          %c0_80 = arith.constant 0 : index
          %61 = vector.load %alloca[%c0_79, %c0_80] : memref<64x16xf32, #tpu.memory_space<vmem>>, vector<64x16xf32>
          %62 = arith.truncf %61 : vector<64x16xf32> to vector<64x16xbf16>
          %c0_81 = arith.constant 0 : index
          %c0_82 = arith.constant 0 : index
          %63 = vector.load %arg1[%c0_81, %c0_82] : memref<16x128xbf16, #tpu.memory_space<vmem>>, vector<16x128xbf16>
          %cst_83 = arith.constant dense<0.000000e+00> : vector<64x128xf32>
          %64 = tpu.matmul %62, %63, %cst_83 {dimension_numbers = #tpu.dot_dimension_numbers<[1], [0], [0], [1], [0, 0, 1, 1], [], []>} : vector<64x16xbf16>, vector<16x128xbf16>, vector<64x128xf32> -> vector<64x128xf32>
          %c0_84 = arith.constant 0 : index
          %c0_85 = arith.constant 0 : index
          %65 = vector.load %arg3[%c0_84, %c0_85] : memref<1x128xf32, #tpu.memory_space<vmem>>, vector<1x128xf32>
          %66 = vector.broadcast %65 : vector<1x128xf32> to vector<64x128xf32>
          %67 = arith.addf %64, %66 : vector<64x128xf32>
          %c0_86 = arith.constant 0 : index
          %c0_87 = arith.constant 0 : index
          %68 = vector.load %arg8[%c0_86, %c0_87] : memref<64x128xf32, #tpu.memory_space<vmem>>, vector<64x128xf32>
          tpu.vector_store %arg8[%c0_86, %c0_87], %67 {strides = array<i32>} : memref<64x128xf32, #tpu.memory_space<vmem>>, vector<64x128xf32>,
          %c0_88 = arith.constant 0 : index
          %c0_89 = arith.constant 0 : index
          %69 = vector.load %arg7[%c0_88, %c0_89] : memref<8x128xf32, #tpu.memory_space<vmem>>, vector<8x128xf32>
          %c0_i32_90 = arith.constant 0 : i32
          %c8_i32 = arith.constant 8 : i32
          %70 = arith.muli %c0_i32_90, %c8_i32 : i32
          %71 = tpu.assume_multiple %70, 8 : i32
          %72 = arith.index_cast %71 : i32 to index
          %c0_91 = arith.constant 0 : index
          %73 = vector.load %arg8[%72, %c0_91] : memref<64x128xf32, #tpu.memory_space<vmem>>, vector<8x128xf32>
          %74 = arith.truncf %69 : vector<8x128xf32> to vector<8x128xbf16>
          %cst_92 = arith.constant dense<0.000000e+00> : vector<8x128xf32>
          %75 = tpu.matmul %74, %2, %cst_92 {dimension_numbers = #tpu.dot_dimension_numbers<[1], [0], [0], [1], [0, 0, 1, 1], [], []>} : vector<8x128xbf16>, vector<128x128xbf16>, vector<8x128xf32> -> vector<8x128xf32>
          %76 = arith.addf %73, %75 : vector<8x128xf32>
          %77 = math.tanh %76 : vector<8x128xf32>
          %c1_i32_93 = arith.constant 1 : i32
          %c8_i32_94 = arith.constant 8 : i32
          %78 = arith.muli %c1_i32_93, %c8_i32_94 : i32
          %79 = tpu.assume_multiple %78, 8 : i32
          %80 = arith.index_cast %79 : i32 to index
          %c0_95 = arith.constant 0 : index
          %81 = vector.load %arg8[%80, %c0_95] : memref<64x128xf32, #tpu.memory_space<vmem>>, vector<8x128xf32>
          %82 = arith.truncf %77 : vector<8x128xf32> to vector<8x128xbf16>
          %cst_96 = arith.constant dense<0.000000e+00> : vector<8x128xf32>
          %83 = tpu.matmul %82, %2, %cst_96 {dimension_numbers = #tpu.dot_dimension_numbers<[1], [0], [0], [1], [0, 0, 1, 1], [], []>} : vector<8x128xbf16>, vector<128x128xbf16>, vector<8x128xf32> -> vector<8x128xf32>
          %84 = arith.addf %81, %83 : vector<8x128xf32>
          %85 = math.tanh %84 : vector<8x128xf32>
          %c2_i32 = arith.constant 2 : i32
          %c8_i32_97 = arith.constant 8 : i32
          %86 = arith.muli %c2_i32, %c8_i32_97 : i32
          %87 = tpu.assume_multiple %86, 8 : i32
          %88 = arith.index_cast %87 : i32 to index
          %c0_98 = arith.constant 0 : index
          %89 = vector.load %arg8[%88, %c0_98] : memref<64x128xf32, #tpu.memory_space<vmem>>, vector<8x128xf32>
          %90 = arith.truncf %85 : vector<8x128xf32> to vector<8x128xbf16>
          %cst_99 = arith.constant dense<0.000000e+00> : vector<8x128xf32>
          %91 = tpu.matmul %90, %2, %cst_99 {dimension_numbers = #tpu.dot_dimension_numbers<[1], [0], [0], [1], [0, 0, 1, 1], [], []>} : vector<8x128xbf16>, vector<128x128xbf16>, vector<8x128xf32> -> vector<8x128xf32>
          %92 = arith.addf %89, %91 : vector<8x128xf32>
          %93 = math.tanh %92 : vector<8x128xf32>
          %c3_i32 = arith.constant 3 : i32
          %c8_i32_100 = arith.constant 8 : i32
          %94 = arith.muli %c3_i32, %c8_i32_100 : i32
          %95 = tpu.assume_multiple %94, 8 : i32
          %96 = arith.index_cast %95 : i32 to index
          %c0_101 = arith.constant 0 : index
          %97 = vector.load %arg8[%96, %c0_101] : memref<64x128xf32, #tpu.memory_space<vmem>>, vector<8x128xf32>
          %98 = arith.truncf %93 : vector<8x128xf32> to vector<8x128xbf16>
          %cst_102 = arith.constant dense<0.000000e+00> : vector<8x128xf32>
          %99 = tpu.matmul %98, %2, %cst_102 {dimension_numbers = #tpu.dot_dimension_numbers<[1], [0], [0], [1], [0, 0, 1, 1], [], []>} : vector<8x128xbf16>, vector<128x128xbf16>, vector<8x128xf32> -> vector<8x128xf32>
          %100 = arith.addf %97, %99 : vector<8x128xf32>
          %101 = math.tanh %100 : vector<8x128xf32>
          %c4_i32 = arith.constant 4 : i32
          %c8_i32_103 = arith.constant 8 : i32
          %102 = arith.muli %c4_i32, %c8_i32_103 : i32
          %103 = tpu.assume_multiple %102, 8 : i32
          %104 = arith.index_cast %103 : i32 to index
          %c0_104 = arith.constant 0 : index
          %105 = vector.load %arg8[%104, %c0_104] : memref<64x128xf32, #tpu.memory_space<vmem>>, vector<8x128xf32>
          %106 = arith.truncf %101 : vector<8x128xf32> to vector<8x128xbf16>
          %cst_105 = arith.constant dense<0.000000e+00> : vector<8x128xf32>
          %107 = tpu.matmul %106, %2, %cst_105 {dimension_numbers = #tpu.dot_dimension_numbers<[1], [0], [0], [1], [0, 0, 1, 1], [], []>} : vector<8x128xbf16>, vector<128x128xbf16>, vector<8x128xf32> -> vector<8x128xf32>
          %108 = arith.addf %105, %107 : vector<8x128xf32>
          %109 = math.tanh %108 : vector<8x128xf32>
          %c5_i32 = arith.constant 5 : i32
          %c8_i32_106 = arith.constant 8 : i32
          %110 = arith.muli %c5_i32, %c8_i32_106 : i32
          %111 = tpu.assume_multiple %110, 8 : i32
          %112 = arith.index_cast %111 : i32 to index
          %c0_107 = arith.constant 0 : index
          %113 = vector.load %arg8[%112, %c0_107] : memref<64x128xf32, #tpu.memory_space<vmem>>, vector<8x128xf32>
          %114 = arith.truncf %109 : vector<8x128xf32> to vector<8x128xbf16>
          %cst_108 = arith.constant dense<0.000000e+00> : vector<8x128xf32>
          %115 = tpu.matmul %114, %2, %cst_108 {dimension_numbers = #tpu.dot_dimension_numbers<[1], [0], [0], [1], [0, 0, 1, 1], [], []>} : vector<8x128xbf16>, vector<128x128xbf16>, vector<8x128xf32> -> vector<8x128xf32>
          %116 = arith.addf %113, %115 : vector<8x128xf32>
          %117 = math.tanh %116 : vector<8x128xf32>
          %c6_i32 = arith.constant 6 : i32
          %c8_i32_109 = arith.constant 8 : i32
          %118 = arith.muli %c6_i32, %c8_i32_109 : i32
          %119 = tpu.assume_multiple %118, 8 : i32
          %120 = arith.index_cast %119 : i32 to index
          %c0_110 = arith.constant 0 : index
          %121 = vector.load %arg8[%120, %c0_110] : memref<64x128xf32, #tpu.memory_space<vmem>>, vector<8x128xf32>
          %122 = arith.truncf %117 : vector<8x128xf32> to vector<8x128xbf16>
          %cst_111 = arith.constant dense<0.000000e+00> : vector<8x128xf32>
          %123 = tpu.matmul %122, %2, %cst_111 {dimension_numbers = #tpu.dot_dimension_numbers<[1], [0], [0], [1], [0, 0, 1, 1], [], []>} : vector<8x128xbf16>, vector<128x128xbf16>, vector<8x128xf32> -> vector<8x128xf32>
          %124 = arith.addf %121, %123 : vector<8x128xf32>
          %125 = math.tanh %124 : vector<8x128xf32>
          %c7_i32 = arith.constant 7 : i32
          %c8_i32_112 = arith.constant 8 : i32
          %126 = arith.muli %c7_i32, %c8_i32_112 : i32
          %127 = tpu.assume_multiple %126, 8 : i32
          %128 = arith.index_cast %127 : i32 to index
          %c0_113 = arith.constant 0 : index
          %129 = vector.load %arg8[%128, %c0_113] : memref<64x128xf32, #tpu.memory_space<vmem>>, vector<8x128xf32>
          %130 = arith.truncf %125 : vector<8x128xf32> to vector<8x128xbf16>
          %cst_114 = arith.constant dense<0.000000e+00> : vector<8x128xf32>
          %131 = tpu.matmul %130, %2, %cst_114 {dimension_numbers = #tpu.dot_dimension_numbers<[1], [0], [0], [1], [0, 0, 1, 1], [], []>} : vector<8x128xbf16>, vector<128x128xbf16>, vector<8x128xf32> -> vector<8x128xf32>
          %132 = arith.addf %129, %131 : vector<8x128xf32>
          %133 = math.tanh %132 : vector<8x128xf32>
          %c8_i32_115 = arith.constant 8 : i32
          %c0_116 = arith.constant 0 : index
          %c0_117 = arith.constant 0 : index
          %134 = vector.load %arg7[%c0_116, %c0_117] : memref<8x128xf32, #tpu.memory_space<vmem>>, vector<8x128xf32>
          tpu.vector_store %arg7[%c0_116, %c0_117], %133 {strides = array<i32>} : memref<8x128xf32, #tpu.memory_space<vmem>>, vector<8x128xf32>,
          "tpu.trace_stop"() : () -> ()
          %false = arith.constant false
          %135 = arith.ori %false, %51 : i1
          %c1_i32_118 = arith.constant 1 : i32
          %136 = arith.addi %arg10, %c1_i32_118 : i32
          %137 = arith.select %135, %136, %arg10 : i32
          %true_119 = arith.constant true
          %c0_i32_120 = arith.constant 0 : i32
          %c1_i32_121 = arith.constant 1 : i32
          %138 = arith.select %true_119, %c1_i32_121, %c0_i32_120 : i32
          %c1_i32_122 = arith.constant 1 : i32
          %139 = arith.cmpi eq, %138, %c1_i32_122 : i32
          %c0_i32_123 = arith.constant 0 : i32
          %140 = arith.select %139, %c0_i32_123, %138 : i32
          %c0_i32_124 = arith.constant 0 : i32
          scf.yield %137, %c0_i32_124 : i32, i32
        }
        %c1_i32_36 = arith.constant 1 : i32
        %30 = arith.subi %29#1, %c1_i32_36 : i32
        %true_37 = arith.constant true
        %31 = arith.select %true_37, %30, %29#1 : i32
        %c-1_i32_38 = arith.constant -1 : i32
        %32 = arith.cmpi eq, %31, %c-1_i32_38 : i32
        %c0_i32_39 = arith.constant 0 : i32
        %33 = arith.select %32, %c0_i32_39, %31 : i32
        %c1_i32_40 = arith.constant 1 : i32
        %34 = arith.subi %3, %c1_i32_40 : i32
        %c1_i32_41 = arith.constant 1 : i32
        %c1_i32_42 = arith.constant 1 : i32
        %35 = arith.muli %c1_i32_41, %c1_i32_42 : i32
        %c0_i32_43 = arith.constant 0 : i32
        %36 = arith.cmpi eq, %34, %c0_i32_43 : i32
        %c1_i32_44 = arith.constant 1 : i32
        %37 = arith.subi %35, %c1_i32_44 : i32
        %38 = arith.cmpi eq, %34, %37 : i32
        %true_45 = arith.constant true
        %c0_i32_46 = arith.constant 0 : i32
        %c-1_i32_47 = arith.constant -1 : i32
        %39 = arith.select %true_45, %c-1_i32_47, %c0_i32_46 : i32
        %c-1_i32_48 = arith.constant -1 : i32
        %40 = arith.cmpi eq, %39, %c-1_i32_48 : i32
        %c0_i32_49 = arith.constant 0 : i32
        %41 = arith.select %40, %c0_i32_49, %39 : i32
        %true_50 = arith.constant true
        %c0_i32_51 = arith.constant 0 : i32
        %c1_i32_52 = arith.constant 1 : i32
        %42 = arith.select %true_50, %c1_i32_52, %c0_i32_51 : i32
        %c1_i32_53 = arith.constant 1 : i32
        %43 = arith.cmpi eq, %42, %c1_i32_53 : i32
        %c0_i32_54 = arith.constant 0 : i32
        %44 = arith.select %43, %c0_i32_54, %42 : i32
        %true_55 = arith.constant true
        %c0_i32_56 = arith.constant 0 : i32
        %c1_i32_57 = arith.constant 1 : i32
        %45 = arith.select %true_55, %c1_i32_57, %c0_i32_56 : i32
        %c1_i32_58 = arith.constant 1 : i32
        %46 = arith.cmpi eq, %45, %c1_i32_58 : i32
        %c0_i32_59 = arith.constant 0 : i32
        %47 = arith.select %46, %c0_i32_59, %45 : i32
      } else {
      }
      tpu.yield
    }) : () -> ()
    %c0_4 = arith.constant 0 : index
    %c0_5 = arith.constant 0 : index
    %4 = vector.load %arg7[%c0_4, %c0_5] : memref<8x128xf32, #tpu.memory_space<vmem>>, vector<8x128xf32>
    %5 = arith.truncf %4 : vector<8x128xf32> to vector<8x128xbf16>
    %c0_6 = arith.constant 0 : index
    %c0_7 = arith.constant 0 : index
    %6 = vector.load %arg4[%c0_6, %c0_7] : memref<128x128xbf16, #tpu.memory_space<vmem>>, vector<128x128xbf16>
    %cst_8 = arith.constant dense<0.000000e+00> : vector<8x128xf32>
    %7 = tpu.matmul %5, %6, %cst_8 {dimension_numbers = #tpu.dot_dimension_numbers<[1], [0], [0], [1], [0, 0, 1, 1], [], []>} : vector<8x128xbf16>, vector<128x128xbf16>, vector<8x128xf32> -> vector<8x128xf32>
    %c0_9 = arith.constant 0 : index
    %c0_10 = arith.constant 0 : index
    %8 = vector.load %arg5[%c0_9, %c0_10] : memref<1x128xf32, #tpu.memory_space<vmem>>, vector<1x128xf32>
    %9 = vector.broadcast %8 : vector<1x128xf32> to vector<8x128xf32>
    %10 = arith.addf %7, %9 : vector<8x128xf32>
    %c0_11 = arith.constant 0 : index
    %c0_12 = arith.constant 0 : index
    %11 = vector.load %arg6[%c0_11, %c0_12] : memref<8x128xf32, #tpu.memory_space<vmem>>, vector<8x128xf32>
    tpu.vector_store %arg6[%c0_11, %c0_12], %10 {strides = array<i32>} : memref<8x128xf32, #tpu.memory_space<vmem>>, vector<8x128xf32>,
    return
  }
}

</mosaic_0001>

<llo_original>
// kernel: rnn_forward.1
$region0: #{rnn_forward.1}
  #allocation0 [shape = 'u32[]', space=smem, size = 0x4, offset = 0x4, fixed_abs, tag = 'smem constant byte address 0x4 - core index']
  #allocation1 [shape = 'u32[144,128]{1,0:T(1,128)}', space=vmem, size = 0x12000, scoped, tag = 'internal scratch']
  #allocation2 [shape = 'f32[8,128]{1,0:T(8,128)}', space=vmem, size = 0x1000, scoped, tag = 'scratch operand']
  #allocation3 [shape = 'f32[64,128]{1,0:T(8,128)}', space=vmem, size = 0x8000, scoped, tag = 'scratch operand']
  #allocation6 [shape = 's32[]', space=sflag, size = 0x4, offset = 0, fixed_abs, tag = 'sflag constant byte address 0x0 - dummy sync flag']
  %s0 = inlined_call_operand.vmem [shape: f32[64,16], index: 0, kind: input, shape index: {}]
  %s1 = inlined_call_operand.vmem [shape: bf16[16,128], index: 1, kind: input, shape index: {}]
  %s2 = inlined_call_operand.vmem [shape: bf16[128,128], index: 2, kind: input, shape index: {}]
  %s3 = inlined_call_operand.vmem [shape: f32[1,128], index: 3, kind: input, shape index: {}]
  %s4 = inlined_call_operand.vmem [shape: bf16[128,128], index: 4, kind: input, shape index: {}]
  %s5 = inlined_call_operand.vmem [shape: f32[1,128], index: 5, kind: input, shape index: {}]
  %s6 = inlined_call_operand.vmem [shape: f32[8,128], index: 6, kind: output, shape index: {}]
  %s7 = sld [smem:[#allocation0]]
  $region66: #{rnn_forward.1} parent=0
    _
  %s9 = ssub.s32 1, %s7
  %s10 = scalar_select 0, %s9, %s7
  // Predicated region
  $region2: #{rnn_forward.1} parent=0 // pred_check
    _
  $region3: #{rnn_forward.1} parent=0 // pred_check_branch
    %12 = sbr.rel (0) target = $region5
  $region4: #{rnn_forward.1} parent=0 // pred_region
    _
  $region5: #{rnn_forward.1} parent=0 // pred_fallthru
    _
  // Predicated region
  $region6: #{rnn_forward.1} parent=0 // pred_check
    _
  $region7: #{rnn_forward.1} parent=0 // pred_check_branch
    %14 = sbr.rel (0) target = $region9
  $region8: #{rnn_forward.1} parent=0 // pred_region
    _
  $region9: #{rnn_forward.1} parent=0 // pred_fallthru
    _
  // Predicated region
  $region10: #{rnn_forward.1} parent=0 // pred_check
    _
  $region11: #{rnn_forward.1} parent=0 // pred_check_branch
    %16 = sbr.rel (0) target = $region13
  $region12: #{rnn_forward.1} parent=0 // pred_region
    _
  $region13: #{rnn_forward.1} parent=0 // pred_fallthru
    _
  // Predicated region
  $region14: #{rnn_forward.1} parent=0 // pred_check
    _
  $region15: #{rnn_forward.1} parent=0 // pred_check_branch
    %18 = sbr.rel (0) target = $region17
  $region16: #{rnn_forward.1} parent=0 // pred_region
    _
  $region17: #{rnn_forward.1} parent=0 // pred_fallthru
    _
  // Predicated region
  $region18: #{rnn_forward.1} parent=0 // pred_check
    _
  $region19: #{rnn_forward.1} parent=0 // pred_check_branch
    %20 = sbr.rel (0) target = $region21
  $region20: #{rnn_forward.1} parent=0 // pred_region
    _
  $region21: #{rnn_forward.1} parent=0 // pred_fallthru
    _
  %22 = vst [vmem:[#allocation2] sm:$0xff] 0.0
  %v23 = vld [vmem:[%s2] sm:$0xf]
  %v24 = vld [vmem:[%s2 + $0x4] sm:$0xf]
  %v25 = vld [vmem:[%s2 + $0x8] sm:$0xf]
  %v26 = vld [vmem:[%s2 + $0xc] sm:$0xf]
  %v27 = vld [vmem:[%s2 + $0x10] sm:$0xf]
  %v28 = vld [vmem:[%s2 + $0x14] sm:$0xf]
  %v29 = vld [vmem:[%s2 + $0x18] sm:$0xf]
  %v30 = vld [vmem:[%s2 + $0x1c] sm:$0xf]
  %v31 = vld [vmem:[%s2 + $0x20] sm:$0xf]
  %v32 = vld [vmem:[%s2 + $0x24] sm:$0xf]
  %v33 = vld [vmem:[%s2 + $0x28] sm:$0xf]
  %v34 = vld [vmem:[%s2 + $0x2c] sm:$0xf]
  %v35 = vld [vmem:[%s2 + $0x30] sm:$0xf]
  %v36 = vld [vmem:[%s2 + $0x34] sm:$0xf]
  %v37 = vld [vmem:[%s2 + $0x38] sm:$0xf]
  %v38 = vld [vmem:[%s2 + $0x3c] sm:$0xf]
  $region22: #{rnn_forward.1} parent=0
    #allocation4 [shape = 'u8[32768]{0}', space=vmem, size = 0x8000, scoped, tag = 'scoped memory for rnn_forward.1']
    $region23: #{rnn_forward.1} parent=22
      #allocation5 [shape = 's32[1]{0}', space=sflag, size = 0x4, scoped, tag = 'scoped memory for rnn_forward.1']
      %p40 = scmp.lt.u32.totalorder 64, 8
      %p41 = pneg %p40
      // Predicated region
      $region24: #{rnn_forward.1} parent=23 // pred_check
        _
      $region25: #{rnn_forward.1} parent=23 // pred_check_branch
        %43 = sbr.rel (%p40) target = $region27
      $region26: #{rnn_forward.1} parent=23 // pred_region
        %s59 = sand.u32 64, 7
        %p60 = scmp.eq.s32.totalorder %s59, 0
        // Predicated region
        $region39: #{rnn_forward.1} parent=26 // pred_check
          %p61 = pneg %p60
        $region40: #{rnn_forward.1} parent=26 // pred_check_branch
          %63 = sbr.rel (%p61) target = $region42
        $region41: #{rnn_forward.1} parent=26 // pred_region
          loop: start=0, step=1, limit=1
          $region43: #{rnn_forward.1} parent=41 // loop_pre_header
            _
          $region44: #{rnn_forward.1} parent=41 // loop_header
            %s65 = sphi 0, %s69
            %p66 = scmp.ge.s32.totalorder %s65, 1
            %s70 = sphi %s0, %s0
            %s71 = sphi [#allocation4], [#allocation4]
          $region45: #{rnn_forward.1} parent=41 // loop_header_branch
            %68 = sbr.rel (%p66) target = $region49
          $region46: #{rnn_forward.1} parent=41 // loop_body
            %v72 = vld [vmem:[%s70] sm:$0xff]
            %73 = vst [vmem:[%s71] sm:$0xff] %v72
            %v74 = vld [vmem:[%s70 + $0x8] sm:$0xff]
            %75 = vst [vmem:[%s71 + $0x8] sm:$0xff] %v74
            %v76 = vld [vmem:[%s70 + $0x10] sm:$0xff]
            %77 = vst [vmem:[%s71 + $0x10] sm:$0xff] %v76
            %v78 = vld [vmem:[%s70 + $0x18] sm:$0xff]
            %79 = vst [vmem:[%s71 + $0x18] sm:$0xff] %v78
            %v80 = vld [vmem:[%s70 + $0x20] sm:$0xff]
            %81 = vst [vmem:[%s71 + $0x20] sm:$0xff] %v80
            %v82 = vld [vmem:[%s70 + $0x28] sm:$0xff]
            %83 = vst [vmem:[%s71 + $0x28] sm:$0xff] %v82
            %v84 = vld [vmem:[%s70 + $0x30] sm:$0xff]
            %85 = vst [vmem:[%s71 + $0x30] sm:$0xff] %v84
            %v86 = vld [vmem:[%s70 + $0x38] sm:$0xff]
            %87 = vst [vmem:[%s71 + $0x38] sm:$0xff] %v86
          $region47: #{rnn_forward.1} parent=41 // loop_footer
            %s69 = sadd.s32 1, %s65
          $region48: #{rnn_forward.1} parent=41 // loop_footer_branch
            %64 = sbr.rel target = $region44
          $region49: #{rnn_forward.1} parent=41 // loop_exit
            _
        $region42: #{rnn_forward.1} parent=26 // pred_fallthru
          _
        %p88 = pneg %p60
        // Predicated region
        $region50: #{rnn_forward.1} parent=26 // pred_check
          _
        $region51: #{rnn_forward.1} parent=26 // pred_check_branch
          %90 = sbr.rel (%p60) target = $region53
        $region52: #{rnn_forward.1} parent=26 // pred_region
          %s91 = sand.u32 64, 7
        $region53: #{rnn_forward.1} parent=26 // pred_fallthru
          _
      $region27: #{rnn_forward.1} parent=23 // pred_fallthru
        _
      // Predicated region
      $region28: #{rnn_forward.1} parent=23 // pred_check
        %p44 = pneg %p40
      $region29: #{rnn_forward.1} parent=23 // pred_check_branch
        %46 = sbr.rel (%p44) target = $region31
      $region30: #{rnn_forward.1} parent=23 // pred_region
        %s47 = sshll.u32 1, 64
        %s48 = ssub.s32 %s47, 1
        loop: start=0, step=1, limit=1
        $region32: #{rnn_forward.1} parent=30 // loop_pre_header
          _
        $region33: #{rnn_forward.1} parent=30 // loop_header
          %s50 = sphi 0, %s54
          %p51 = scmp.ge.s32.totalorder %s50, 1
          %s55 = sphi %s0, %s0
          %s56 = sphi [#allocation4], [#allocation4]
        $region34: #{rnn_forward.1} parent=30 // loop_header_branch
          %53 = sbr.rel (%p51) target = $region38
        $region35: #{rnn_forward.1} parent=30 // loop_body
          %v57 = vld [vmem:[%s55] sm:%s48]
          %58 = vst [vmem:[%s56] sm:%s48] %v57
        $region36: #{rnn_forward.1} parent=30 // loop_footer
          %s54 = sadd.s32 1, %s50
        $region37: #{rnn_forward.1} parent=30 // loop_footer_branch
          %49 = sbr.rel target = $region33
        $region38: #{rnn_forward.1} parent=30 // loop_exit
          _
      $region31: #{rnn_forward.1} parent=23 // pred_fallthru
        _
      // Predicated region
      $region54: #{rnn_forward.1} parent=23 // pred_check
        _
      $region55: #{rnn_forward.1} parent=23 // pred_check_branch
        %94 = sbr.rel (0) target = $region57
      $region56: #{rnn_forward.1} parent=23 // pred_region
        %95 = vsyncadd [#allocation5], 1024
      $region57: #{rnn_forward.1} parent=23 // pred_fallthru
        _
      %s96 = smul.u32 64, 1
      %s97 = sshll.u32 %s96, 4
      %98 = dma.done [#allocation5], %s97
    %v99 = vld [vmem:[#allocation4] sm:$0xff]
    %v100 = vld [vmem:[#allocation4 + $0x8] sm:$0xff]
    %v101 = vld [vmem:[#allocation4 + $0x10] sm:$0xff]
    %v102 = vld [vmem:[#allocation4 + $0x18] sm:$0xff]
    %v103 = vld [vmem:[#allocation4 + $0x20] sm:$0xff]
    %v104 = vld [vmem:[#allocation4 + $0x28] sm:$0xff]
    %v105 = vld [vmem:[#allocation4 + $0x30] sm:$0xff]
    %v106 = vld [vmem:[#allocation4 + $0x38] sm:$0xff]
    %v107 = vpack.c.bf16 %v100, %v99
    %v108 = vpack.c.bf16 %v102, %v101
    %v109 = vpack.c.bf16 %v104, %v103
    %v110 = vpack.c.bf16 %v106, %v105
    %v111 = vld [vmem:[%s1] sm:$0xf]
    %v112 = vld [vmem:[%s1 + $0x4] sm:$0xf]
    %v113 = vld [vmem:[%s3] sm:$0x1]
    %v115 = vlaneseq
    %v116 = vshrl.u32 %v115, 7
    %v117 = vsub.s32 0, %v116
    %v118 = vrot.slane %v113, %v117
    %v122 = vunpack.c.l.b16 %v111
    %v123 = vunpack.c.l.b16 %v112
    %v124 = vpack.c.b16 %v123, %v122
    %vm126 = vcmask 130048
    %v128 = vsel %vm126, %v107, 0
    %v131 = vsel %vm126, %v108, 0
    %v134 = vsel %vm126, %v109, 0
    %v137 = vsel %vm126, %v110, 0
    %139 = vmatprep.subr.bf16.mxu0 0
    %140 = vmatpush1.bf16.msra.mxu0 0
    %141 = vmatprep.subr.bf16.mxu0 0
    %142 = vmatpush1.bf16.msra.mxu0 0
    %143 = vmatprep.subr.bf16.mxu0 0
    %144 = vmatpush1.bf16.msra.mxu0 0
    %145 = vmatprep.subr.bf16.mxu0 0
    %146 = vmatpush1.bf16.msra.mxu0 0
    %147 = vmatprep.subr.bf16.mxu0 0
    %148 = vmatpush1.bf16.msra.mxu0 0
    %149 = vmatprep.subr.bf16.mxu0 0
    %150 = vmatpush1.bf16.msra.mxu0 0
    %151 = vmatprep.subr.bf16.mxu0 0
    %152 = vmatpush1.bf16.msra.mxu0 0
    %153 = vmatprep.subr.bf16.mxu0 0
    %154 = vmatpush1.bf16.msra.mxu0 %v124
    %155 = vmatprep.subr.bf16.mxu0 0
    %156 = vmatpush2.bf16.msra.mxu0 0
    %157 = vmatprep.subr.bf16.mxu0 0
    %158 = vmatpush2.bf16.msra.mxu0 0
    %159 = vmatprep.subr.bf16.mxu0 0
    %160 = vmatpush2.bf16.msra.mxu0 0
    %161 = vmatprep.subr.bf16.mxu0 0
    %162 = vmatpush2.bf16.msra.mxu0 0
    %163 = vmatprep.subr.bf16.mxu0 0
    %164 = vmatpush2.bf16.msra.mxu0 0
    %165 = vmatprep.subr.bf16.mxu0 0
    %166 = vmatpush2.bf16.msra.mxu0 0
    %167 = vmatprep.subr.bf16.mxu0 0
    %168 = vmatpush2.bf16.msra.mxu0 0
    %169 = vmatprep.subr.bf16.mxu0 0
    %170 = vmatpush2.bf16.msra.mxu0 0
    %171 = vmatprep.mubr.bf16.mxu0 0
    %172 = vmatmul.mubr.bf16.gmra.mxu0 %v128
    %v173 = vpop.f32.mrf.mxu0
    %v174 = vadd.f32 %v118, %v173
    %v175 = vpop.f32.mrf.mxu0
    %v176 = vpop.f32.mrf.mxu0
    %v177 = vadd.f32 %v118, %v176
    %v178 = vpop.f32.mrf.mxu0
    %179 = vmatprep.mubr.bf16.mxu0 0
    %180 = vmatmul.mubr.bf16.gmra.mxu0 %v131
    %v181 = vpop.f32.mrf.mxu0
    %v182 = vadd.f32 %v118, %v181
    %v183 = vpop.f32.mrf.mxu0
    %v184 = vpop.f32.mrf.mxu0
    %v185 = vadd.f32 %v118, %v184
    %v186 = vpop.f32.mrf.mxu0
    %187 = vmatprep.mubr.bf16.mxu0 0
    %188 = vmatmul.mubr.bf16.gmra.mxu0 %v134
    %v189 = vpop.f32.mrf.mxu0
    %v190 = vadd.f32 %v118, %v189
    %v191 = vpop.f32.mrf.mxu0
    %v192 = vpop.f32.mrf.mxu0
    %v193 = vadd.f32 %v118, %v192
    %v194 = vpop.f32.mrf.mxu0
    %195 = vmatprep.mubr.bf16.mxu0 0
    %196 = vmatmul.mubr.bf16.gmra.mxu0 %v137
    %v197 = vpop.f32.mrf.mxu0
    %v198 = vadd.f32 %v118, %v197
    %v199 = vpop.f32.mrf.mxu0
    %v200 = vpop.f32.mrf.mxu0
    %v201 = vadd.f32 %v118, %v200
    %v202 = vpop.f32.mrf.mxu0
    %203 = vdwg.mxu0
    %204 = vst [vmem:[#allocation3] sm:$0xff] %v174
    %205 = vst [vmem:[#allocation3 + $0x8] sm:$0xff] %v177
    %206 = vst [vmem:[#allocation3 + $0x10] sm:$0xff] %v182
    %207 = vst [vmem:[#allocation3 + $0x18] sm:$0xff] %v185
    %208 = vst [vmem:[#allocation3 + $0x20] sm:$0xff] %v190
    %209 = vst [vmem:[#allocation3 + $0x28] sm:$0xff] %v193
    %210 = vst [vmem:[#allocation3 + $0x30] sm:$0xff] %v198
    %211 = vst [vmem:[#allocation3 + $0x38] sm:$0xff] %v201
    %v212 = vld [vmem:[#allocation2] sm:$0xff]
    %v213 = vld [vmem:[#allocation3] sm:$0xff]
    %v214 = vpack.c.bf16 %v212, %v212
    %v231 = vunpack.c.l.b16 %v23
    %v232 = vunpack.c.l.b16 %v24
    %v233 = vunpack.c.l.b16 %v25
    %v234 = vunpack.c.l.b16 %v26
    %v235 = vunpack.c.l.b16 %v27
    %v236 = vunpack.c.l.b16 %v28
    %v237 = vunpack.c.l.b16 %v29
    %v238 = vunpack.c.l.b16 %v30
    %v239 = vunpack.c.l.b16 %v31
    %v240 = vunpack.c.l.b16 %v32
    %v241 = vunpack.c.l.b16 %v33
    %v242 = vunpack.c.l.b16 %v34
    %v243 = vunpack.c.l.b16 %v35
    %v244 = vunpack.c.l.b16 %v36
    %v245 = vunpack.c.l.b16 %v37
    %v246 = vunpack.c.l.b16 %v38
    %v247 = vpack.c.b16 %v232, %v231
    %v248 = vpack.c.b16 %v234, %v233
    %v249 = vpack.c.b16 %v236, %v235
    %v250 = vpack.c.b16 %v238, %v237
    %v251 = vpack.c.b16 %v240, %v239
    %v252 = vpack.c.b16 %v242, %v241
    %v253 = vpack.c.b16 %v244, %v243
    %v254 = vpack.c.b16 %v246, %v245
    %263 = vmatprep.subr.bf16.mxu0 0
    %264 = vmatpush1.bf16.msra.mxu0 %v254
    %265 = vmatprep.subr.bf16.mxu0 0
    %266 = vmatpush1.bf16.msra.mxu0 %v253
    %267 = vmatprep.subr.bf16.mxu0 0
    %268 = vmatpush1.bf16.msra.mxu0 %v252
    %269 = vmatprep.subr.bf16.mxu0 0
    %270 = vmatpush1.bf16.msra.mxu0 %v251
    %271 = vmatprep.subr.bf16.mxu0 0
    %272 = vmatpush1.bf16.msra.mxu0 %v250
    %273 = vmatprep.subr.bf16.mxu0 0
    %274 = vmatpush1.bf16.msra.mxu0 %v249
    %275 = vmatprep.subr.bf16.mxu0 0
    %276 = vmatpush1.bf16.msra.mxu0 %v248
    %277 = vmatprep.subr.bf16.mxu0 0
    %278 = vmatpush1.bf16.msra.mxu0 %v247
    %279 = vmatprep.subr.bf16.mxu0 0
    %280 = vmatpush2.bf16.msra.mxu0 0
    %281 = vmatprep.subr.bf16.mxu0 0
    %282 = vmatpush2.bf16.msra.mxu0 0
    %283 = vmatprep.subr.bf16.mxu0 0
    %284 = vmatpush2.bf16.msra.mxu0 0
    %285 = vmatprep.subr.bf16.mxu0 0
    %286 = vmatpush2.bf16.msra.mxu0 0
    %287 = vmatprep.subr.bf16.mxu0 0
    %288 = vmatpush2.bf16.msra.mxu0 0
    %289 = vmatprep.subr.bf16.mxu0 0
    %290 = vmatpush2.bf16.msra.mxu0 0
    %291 = vmatprep.subr.bf16.mxu0 0
    %292 = vmatpush2.bf16.msra.mxu0 0
    %293 = vmatprep.subr.bf16.mxu0 0
    %294 = vmatpush2.bf16.msra.mxu0 0
    %295 = vmatprep.mubr.bf16.mxu0 0
    %296 = vmatmul.mubr.bf16.gmra.mxu0 %v214
    %v297 = vpop.f32.mrf.mxu0
    %v298 = vadd.f32 0.0, %v297
    %v299 = vpop.f32.mrf.mxu0
    %v300 = vpop.f32.mrf.mxu0
    %v301 = vpop.f32.mrf.mxu0
    %302 = vdwg.mxu0
    %v303 = vadd.f32 %v213, %v298
    %v304 = vtanh.pop %v303
    %s305 = scalar_lea.vmem [#allocation3], 8
    %v306 = vld [vmem:[%s305] sm:$0xff]
    %v307 = vpack.c.bf16 %v304, %v304
    %308 = vmatprep.subr.bf16.mxu0 0
    %309 = vmatpush1.bf16.msra.mxu0 %v254
    %310 = vmatprep.subr.bf16.mxu0 0
    %311 = vmatpush1.bf16.msra.mxu0 %v253
    %312 = vmatprep.subr.bf16.mxu0 0
    %313 = vmatpush1.bf16.msra.mxu0 %v252
    %314 = vmatprep.subr.bf16.mxu0 0
    %315 = vmatpush1.bf16.msra.mxu0 %v251
    %316 = vmatprep.subr.bf16.mxu0 0
    %317 = vmatpush1.bf16.msra.mxu0 %v250
    %318 = vmatprep.subr.bf16.mxu0 0
    %319 = vmatpush1.bf16.msra.mxu0 %v249
    %320 = vmatprep.subr.bf16.mxu0 0
    %321 = vmatpush1.bf16.msra.mxu0 %v248
    %322 = vmatprep.subr.bf16.mxu0 0
    %323 = vmatpush1.bf16.msra.mxu0 %v247
    %324 = vmatprep.subr.bf16.mxu0 0
    %325 = vmatpush2.bf16.msra.mxu0 0
    %326 = vmatprep.subr.bf16.mxu0 0
    %327 = vmatpush2.bf16.msra.mxu0 0
    %328 = vmatprep.subr.bf16.mxu0 0
    %329 = vmatpush2.bf16.msra.mxu0 0
    %330 = vmatprep.subr.bf16.mxu0 0
    %331 = vmatpush2.bf16.msra.mxu0 0
    %332 = vmatprep.subr.bf16.mxu0 0
    %333 = vmatpush2.bf16.msra.mxu0 0
    %334 = vmatprep.subr.bf16.mxu0 0
    %335 = vmatpush2.bf16.msra.mxu0 0
    %336 = vmatprep.subr.bf16.mxu0 0
    %337 = vmatpush2.bf16.msra.mxu0 0
    %338 = vmatprep.subr.bf16.mxu0 0
    %339 = vmatpush2.bf16.msra.mxu0 0
    %340 = vmatprep.mubr.bf16.mxu0 0
    %341 = vmatmul.mubr.bf16.gmra.mxu0 %v307
    %v342 = vpop.f32.mrf.mxu0
    %v343 = vadd.f32 0.0, %v342
    %v344 = vpop.f32.mrf.mxu0
    %v345 = vpop.f32.mrf.mxu0
    %v346 = vpop.f32.mrf.mxu0
    %347 = vdwg.mxu0
    %v348 = vadd.f32 %v306, %v343
    %v349 = vtanh.pop %v348
    %s350 = scalar_lea.vmem [#allocation3], 16
    %v351 = vld [vmem:[%s350] sm:$0xff]
    %v352 = vpack.c.bf16 %v349, %v349
    %353 = vmatprep.subr.bf16.mxu0 0
    %354 = vmatpush1.bf16.msra.mxu0 %v254
    %355 = vmatprep.subr.bf16.mxu0 0
    %356 = vmatpush1.bf16.msra.mxu0 %v253
    %357 = vmatprep.subr.bf16.mxu0 0
    %358 = vmatpush1.bf16.msra.mxu0 %v252
    %359 = vmatprep.subr.bf16.mxu0 0
    %360 = vmatpush1.bf16.msra.mxu0 %v251
    %361 = vmatprep.subr.bf16.mxu0 0
    %362 = vmatpush1.bf16.msra.mxu0 %v250
    %363 = vmatprep.subr.bf16.mxu0 0
    %364 = vmatpush1.bf16.msra.mxu0 %v249
    %365 = vmatprep.subr.bf16.mxu0 0
    %366 = vmatpush1.bf16.msra.mxu0 %v248
    %367 = vmatprep.subr.bf16.mxu0 0
    %368 = vmatpush1.bf16.msra.mxu0 %v247
    %369 = vmatprep.subr.bf16.mxu0 0
    %370 = vmatpush2.bf16.msra.mxu0 0
    %371 = vmatprep.subr.bf16.mxu0 0
    %372 = vmatpush2.bf16.msra.mxu0 0
    %373 = vmatprep.subr.bf16.mxu0 0
    %374 = vmatpush2.bf16.msra.mxu0 0
    %375 = vmatprep.subr.bf16.mxu0 0
    %376 = vmatpush2.bf16.msra.mxu0 0
    %377 = vmatprep.subr.bf16.mxu0 0
    %378 = vmatpush2.bf16.msra.mxu0 0
    %379 = vmatprep.subr.bf16.mxu0 0
    %380 = vmatpush2.bf16.msra.mxu0 0
    %381 = vmatprep.subr.bf16.mxu0 0
    %382 = vmatpush2.bf16.msra.mxu0 0
    %383 = vmatprep.subr.bf16.mxu0 0
    %384 = vmatpush2.bf16.msra.mxu0 0
    %385 = vmatprep.mubr.bf16.mxu0 0
    %386 = vmatmul.mubr.bf16.gmra.mxu0 %v352
    %v387 = vpop.f32.mrf.mxu0
    %v388 = vadd.f32 0.0, %v387
    %v389 = vpop.f32.mrf.mxu0
    %v390 = vpop.f32.mrf.mxu0
    %v391 = vpop.f32.mrf.mxu0
    %392 = vdwg.mxu0
    %v393 = vadd.f32 %v351, %v388
    %v394 = vtanh.pop %v393
    %s395 = scalar_lea.vmem [#allocation3], 24
    %v396 = vld [vmem:[%s395] sm:$0xff]
    %v397 = vpack.c.bf16 %v394, %v394
    %398 = vmatprep.subr.bf16.mxu0 0
    %399 = vmatpush1.bf16.msra.mxu0 %v254
    %400 = vmatprep.subr.bf16.mxu0 0
    %401 = vmatpush1.bf16.msra.mxu0 %v253
    %402 = vmatprep.subr.bf16.mxu0 0
    %403 = vmatpush1.bf16.msra.mxu0 %v252
    %404 = vmatprep.subr.bf16.mxu0 0
    %405 = vmatpush1.bf16.msra.mxu0 %v251
    %406 = vmatprep.subr.bf16.mxu0 0
    %407 = vmatpush1.bf16.msra.mxu0 %v250
    %408 = vmatprep.subr.bf16.mxu0 0
    %409 = vmatpush1.bf16.msra.mxu0 %v249
    %410 = vmatprep.subr.bf16.mxu0 0
    %411 = vmatpush1.bf16.msra.mxu0 %v248
    %412 = vmatprep.subr.bf16.mxu0 0
    %413 = vmatpush1.bf16.msra.mxu0 %v247
    %414 = vmatprep.subr.bf16.mxu0 0
    %415 = vmatpush2.bf16.msra.mxu0 0
    %416 = vmatprep.subr.bf16.mxu0 0
    %417 = vmatpush2.bf16.msra.mxu0 0
    %418 = vmatprep.subr.bf16.mxu0 0
    %419 = vmatpush2.bf16.msra.mxu0 0
    %420 = vmatprep.subr.bf16.mxu0 0
    %421 = vmatpush2.bf16.msra.mxu0 0
    %422 = vmatprep.subr.bf16.mxu0 0
    %423 = vmatpush2.bf16.msra.mxu0 0
    %424 = vmatprep.subr.bf16.mxu0 0
    %425 = vmatpush2.bf16.msra.mxu0 0
    %426 = vmatprep.subr.bf16.mxu0 0
    %427 = vmatpush2.bf16.msra.mxu0 0
    %428 = vmatprep.subr.bf16.mxu0 0
    %429 = vmatpush2.bf16.msra.mxu0 0
    %430 = vmatprep.mubr.bf16.mxu0 0
    %431 = vmatmul.mubr.bf16.gmra.mxu0 %v397
    %v432 = vpop.f32.mrf.mxu0
    %v433 = vadd.f32 0.0, %v432
    %v434 = vpop.f32.mrf.mxu0
    %v435 = vpop.f32.mrf.mxu0
    %v436 = vpop.f32.mrf.mxu0
    %437 = vdwg.mxu0
    %v438 = vadd.f32 %v396, %v433
    %v439 = vtanh.pop %v438
    %s440 = scalar_lea.vmem [#allocation3], 32
    %v441 = vld [vmem:[%s440] sm:$0xff]
    %v442 = vpack.c.bf16 %v439, %v439
    %443 = vmatprep.subr.bf16.mxu0 0
    %444 = vmatpush1.bf16.msra.mxu0 %v254
    %445 = vmatprep.subr.bf16.mxu0 0
    %446 = vmatpush1.bf16.msra.mxu0 %v253
    %447 = vmatprep.subr.bf16.mxu0 0
    %448 = vmatpush1.bf16.msra.mxu0 %v252
    %449 = vmatprep.subr.bf16.mxu0 0
    %450 = vmatpush1.bf16.msra.mxu0 %v251
    %451 = vmatprep.subr.bf16.mxu0 0
    %452 = vmatpush1.bf16.msra.mxu0 %v250
    %453 = vmatprep.subr.bf16.mxu0 0
    %454 = vmatpush1.bf16.msra.mxu0 %v249
    %455 = vmatprep.subr.bf16.mxu0 0
    %456 = vmatpush1.bf16.msra.mxu0 %v248
    %457 = vmatprep.subr.bf16.mxu0 0
    %458 = vmatpush1.bf16.msra.mxu0 %v247
    %459 = vmatprep.subr.bf16.mxu0 0
    %460 = vmatpush2.bf16.msra.mxu0 0
    %461 = vmatprep.subr.bf16.mxu0 0
    %462 = vmatpush2.bf16.msra.mxu0 0
    %463 = vmatprep.subr.bf16.mxu0 0
    %464 = vmatpush2.bf16.msra.mxu0 0
    %465 = vmatprep.subr.bf16.mxu0 0
    %466 = vmatpush2.bf16.msra.mxu0 0
    %467 = vmatprep.subr.bf16.mxu0 0
    %468 = vmatpush2.bf16.msra.mxu0 0
    %469 = vmatprep.subr.bf16.mxu0 0
    %470 = vmatpush2.bf16.msra.mxu0 0
    %471 = vmatprep.subr.bf16.mxu0 0
    %472 = vmatpush2.bf16.msra.mxu0 0
    %473 = vmatprep.subr.bf16.mxu0 0
    %474 = vmatpush2.bf16.msra.mxu0 0
    %475 = vmatprep.mubr.bf16.mxu0 0
    %476 = vmatmul.mubr.bf16.gmra.mxu0 %v442
    %v477 = vpop.f32.mrf.mxu0
    %v478 = vadd.f32 0.0, %v477
    %v479 = vpop.f32.mrf.mxu0
    %v480 = vpop.f32.mrf.mxu0
    %v481 = vpop.f32.mrf.mxu0
    %482 = vdwg.mxu0
    %v483 = vadd.f32 %v441, %v478
    %v484 = vtanh.pop %v483
    %s485 = scalar_lea.vmem [#allocation3], 40
    %v486 = vld [vmem:[%s485] sm:$0xff]
    %v487 = vpack.c.bf16 %v484, %v484
    %488 = vmatprep.subr.bf16.mxu0 0
    %489 = vmatpush1.bf16.msra.mxu0 %v254
    %490 = vmatprep.subr.bf16.mxu0 0
    %491 = vmatpush1.bf16.msra.mxu0 %v253
    %492 = vmatprep.subr.bf16.mxu0 0
    %493 = vmatpush1.bf16.msra.mxu0 %v252
    %494 = vmatprep.subr.bf16.mxu0 0
    %495 = vmatpush1.bf16.msra.mxu0 %v251
    %496 = vmatprep.subr.bf16.mxu0 0
    %497 = vmatpush1.bf16.msra.mxu0 %v250
    %498 = vmatprep.subr.bf16.mxu0 0
    %499 = vmatpush1.bf16.msra.mxu0 %v249
    %500 = vmatprep.subr.bf16.mxu0 0
    %501 = vmatpush1.bf16.msra.mxu0 %v248
    %502 = vmatprep.subr.bf16.mxu0 0
    %503 = vmatpush1.bf16.msra.mxu0 %v247
    %504 = vmatprep.subr.bf16.mxu0 0
    %505 = vmatpush2.bf16.msra.mxu0 0
    %506 = vmatprep.subr.bf16.mxu0 0
    %507 = vmatpush2.bf16.msra.mxu0 0
    %508 = vmatprep.subr.bf16.mxu0 0
    %509 = vmatpush2.bf16.msra.mxu0 0
    %510 = vmatprep.subr.bf16.mxu0 0
    %511 = vmatpush2.bf16.msra.mxu0 0
    %512 = vmatprep.subr.bf16.mxu0 0
    %513 = vmatpush2.bf16.msra.mxu0 0
    %514 = vmatprep.subr.bf16.mxu0 0
    %515 = vmatpush2.bf16.msra.mxu0 0
    %516 = vmatprep.subr.bf16.mxu0 0
    %517 = vmatpush2.bf16.msra.mxu0 0
    %518 = vmatprep.subr.bf16.mxu0 0
    %519 = vmatpush2.bf16.msra.mxu0 0
    %520 = vmatprep.mubr.bf16.mxu0 0
    %521 = vmatmul.mubr.bf16.gmra.mxu0 %v487
    %v522 = vpop.f32.mrf.mxu0
    %v523 = vadd.f32 0.0, %v522
    %v524 = vpop.f32.mrf.mxu0
    %v525 = vpop.f32.mrf.mxu0
    %v526 = vpop.f32.mrf.mxu0
    %527 = vdwg.mxu0
    %v528 = vadd.f32 %v486, %v523
    %v529 = vtanh.pop %v528
    %s530 = scalar_lea.vmem [#allocation3], 48
    %v531 = vld [vmem:[%s530] sm:$0xff]
    %v532 = vpack.c.bf16 %v529, %v529
    %533 = vmatprep.subr.bf16.mxu0 0
    %534 = vmatpush1.bf16.msra.mxu0 %v254
    %535 = vmatprep.subr.bf16.mxu0 0
    %536 = vmatpush1.bf16.msra.mxu0 %v253
    %537 = vmatprep.subr.bf16.mxu0 0
    %538 = vmatpush1.bf16.msra.mxu0 %v252
    %539 = vmatprep.subr.bf16.mxu0 0
    %540 = vmatpush1.bf16.msra.mxu0 %v251
    %541 = vmatprep.subr.bf16.mxu0 0
    %542 = vmatpush1.bf16.msra.mxu0 %v250
    %543 = vmatprep.subr.bf16.mxu0 0
    %544 = vmatpush1.bf16.msra.mxu0 %v249
    %545 = vmatprep.subr.bf16.mxu0 0
    %546 = vmatpush1.bf16.msra.mxu0 %v248
    %547 = vmatprep.subr.bf16.mxu0 0
    %548 = vmatpush1.bf16.msra.mxu0 %v247
    %549 = vmatprep.subr.bf16.mxu0 0
    %550 = vmatpush2.bf16.msra.mxu0 0
    %551 = vmatprep.subr.bf16.mxu0 0
    %552 = vmatpush2.bf16.msra.mxu0 0
    %553 = vmatprep.subr.bf16.mxu0 0
    %554 = vmatpush2.bf16.msra.mxu0 0
    %555 = vmatprep.subr.bf16.mxu0 0
    %556 = vmatpush2.bf16.msra.mxu0 0
    %557 = vmatprep.subr.bf16.mxu0 0
    %558 = vmatpush2.bf16.msra.mxu0 0
    %559 = vmatprep.subr.bf16.mxu0 0
    %560 = vmatpush2.bf16.msra.mxu0 0
    %561 = vmatprep.subr.bf16.mxu0 0
    %562 = vmatpush2.bf16.msra.mxu0 0
    %563 = vmatprep.subr.bf16.mxu0 0
    %564 = vmatpush2.bf16.msra.mxu0 0
    %565 = vmatprep.mubr.bf16.mxu0 0
    %566 = vmatmul.mubr.bf16.gmra.mxu0 %v532
    %v567 = vpop.f32.mrf.mxu0
    %v568 = vadd.f32 0.0, %v567
    %v569 = vpop.f32.mrf.mxu0
    %v570 = vpop.f32.mrf.mxu0
    %v571 = vpop.f32.mrf.mxu0
    %572 = vdwg.mxu0
    %v573 = vadd.f32 %v531, %v568
    %v574 = vtanh.pop %v573
    %s575 = scalar_lea.vmem [#allocation3], 56
    %v576 = vld [vmem:[%s575] sm:$0xff]
    %v577 = vpack.c.bf16 %v574, %v574
    %578 = vmatprep.subr.bf16.mxu0 0
    %579 = vmatpush1.bf16.msra.mxu0 %v254
    %580 = vmatprep.subr.bf16.mxu0 0
    %581 = vmatpush1.bf16.msra.mxu0 %v253
    %582 = vmatprep.subr.bf16.mxu0 0
    %583 = vmatpush1.bf16.msra.mxu0 %v252
    %584 = vmatprep.subr.bf16.mxu0 0
    %585 = vmatpush1.bf16.msra.mxu0 %v251
    %586 = vmatprep.subr.bf16.mxu0 0
    %587 = vmatpush1.bf16.msra.mxu0 %v250
    %588 = vmatprep.subr.bf16.mxu0 0
    %589 = vmatpush1.bf16.msra.mxu0 %v249
    %590 = vmatprep.subr.bf16.mxu0 0
    %591 = vmatpush1.bf16.msra.mxu0 %v248
    %592 = vmatprep.subr.bf16.mxu0 0
    %593 = vmatpush1.bf16.msra.mxu0 %v247
    %594 = vmatprep.subr.bf16.mxu0 0
    %595 = vmatpush2.bf16.msra.mxu0 0
    %596 = vmatprep.subr.bf16.mxu0 0
    %597 = vmatpush2.bf16.msra.mxu0 0
    %598 = vmatprep.subr.bf16.mxu0 0
    %599 = vmatpush2.bf16.msra.mxu0 0
    %600 = vmatprep.subr.bf16.mxu0 0
    %601 = vmatpush2.bf16.msra.mxu0 0
    %602 = vmatprep.subr.bf16.mxu0 0
    %603 = vmatpush2.bf16.msra.mxu0 0
    %604 = vmatprep.subr.bf16.mxu0 0
    %605 = vmatpush2.bf16.msra.mxu0 0
    %606 = vmatprep.subr.bf16.mxu0 0
    %607 = vmatpush2.bf16.msra.mxu0 0
    %608 = vmatprep.subr.bf16.mxu0 0
    %609 = vmatpush2.bf16.msra.mxu0 0
    %610 = vmatprep.mubr.bf16.mxu0 0
    %611 = vmatmul.mubr.bf16.gmra.mxu0 %v577
    %v612 = vpop.f32.mrf.mxu0
    %v613 = vadd.f32 0.0, %v612
    %v614 = vpop.f32.mrf.mxu0
    %v615 = vpop.f32.mrf.mxu0
    %v616 = vpop.f32.mrf.mxu0
    %617 = vdwg.mxu0
    %v618 = vadd.f32 %v576, %v613
    %v619 = vtanh.pop %v618
    %620 = vst [vmem:[#allocation2] sm:$0xff] %v619
  %v621 = vld [vmem:[#allocation2] sm:$0xff]
  %v622 = vpack.c.bf16 %v621, %v621
  %v623 = vld [vmem:[%s4] sm:$0xf]
  %v624 = vld [vmem:[%s4 + $0x4] sm:$0xf]
  %v625 = vld [vmem:[%s4 + $0x8] sm:$0xf]
  %v626 = vld [vmem:[%s4 + $0xc] sm:$0xf]
  %v627 = vld [vmem:[%s4 + $0x10] sm:$0xf]
  %v628 = vld [vmem:[%s4 + $0x14] sm:$0xf]
  %v629 = vld [vmem:[%s4 + $0x18] sm:$0xf]
  %v630 = vld [vmem:[%s4 + $0x1c] sm:$0xf]
  %v631 = vld [vmem:[%s4 + $0x20] sm:$0xf]
  %v632 = vld [vmem:[%s4 + $0x24] sm:$0xf]
  %v633 = vld [vmem:[%s4 + $0x28] sm:$0xf]
  %v634 = vld [vmem:[%s4 + $0x2c] sm:$0xf]
  %v635 = vld [vmem:[%s4 + $0x30] sm:$0xf]
  %v636 = vld [vmem:[%s4 + $0x34] sm:$0xf]
  %v637 = vld [vmem:[%s4 + $0x38] sm:$0xf]
  %v638 = vld [vmem:[%s4 + $0x3c] sm:$0xf]
  %v639 = vld [vmem:[%s5] sm:$0x1]
  %v641 = vlaneseq
  %v642 = vshrl.u32 %v641, 7
  %v643 = vsub.s32 0, %v642
  %v644 = vrot.slane %v639, %v643
  %v662 = vunpack.c.l.b16 %v623
  %v663 = vunpack.c.l.b16 %v624
  %v664 = vunpack.c.l.b16 %v625
  %v665 = vunpack.c.l.b16 %v626
  %v666 = vunpack.c.l.b16 %v627
  %v667 = vunpack.c.l.b16 %v628
  %v668 = vunpack.c.l.b16 %v629
  %v669 = vunpack.c.l.b16 %v630
  %v670 = vunpack.c.l.b16 %v631
  %v671 = vunpack.c.l.b16 %v632
  %v672 = vunpack.c.l.b16 %v633
  %v673 = vunpack.c.l.b16 %v634
  %v674 = vunpack.c.l.b16 %v635
  %v675 = vunpack.c.l.b16 %v636
  %v676 = vunpack.c.l.b16 %v637
  %v677 = vunpack.c.l.b16 %v638
  %v678 = vpack.c.b16 %v663, %v662
  %v679 = vpack.c.b16 %v665, %v664
  %v680 = vpack.c.b16 %v667, %v666
  %v681 = vpack.c.b16 %v669, %v668
  %v682 = vpack.c.b16 %v671, %v670
  %v683 = vpack.c.b16 %v673, %v672
  %v684 = vpack.c.b16 %v675, %v674
  %v685 = vpack.c.b16 %v677, %v676
  %694 = vmatprep.subr.bf16.mxu0 0
  %695 = vmatpush1.bf16.msra.mxu0 %v685
  %696 = vmatprep.subr.bf16.mxu0 0
  %697 = vmatpush1.bf16.msra.mxu0 %v684
  %698 = vmatprep.subr.bf16.mxu0 0
  %699 = vmatpush1.bf16.msra.mxu0 %v683
  %700 = vmatprep.subr.bf16.mxu0 0
  %701 = vmatpush1.bf16.msra.mxu0 %v682
  %702 = vmatprep.subr.bf16.mxu0 0
  %703 = vmatpush1.bf16.msra.mxu0 %v681
  %704 = vmatprep.subr.bf16.mxu0 0
  %705 = vmatpush1.bf16.msra.mxu0 %v680
  %706 = vmatprep.subr.bf16.mxu0 0
  %707 = vmatpush1.bf16.msra.mxu0 %v679
  %708 = vmatprep.subr.bf16.mxu0 0
  %709 = vmatpush1.bf16.msra.mxu0 %v678
  %710 = vmatprep.subr.bf16.mxu0 0
  %711 = vmatpush2.bf16.msra.mxu0 0
  %712 = vmatprep.subr.bf16.mxu0 0
  %713 = vmatpush2.bf16.msra.mxu0 0
  %714 = vmatprep.subr.bf16.mxu0 0
  %715 = vmatpush2.bf16.msra.mxu0 0
  %716 = vmatprep.subr.bf16.mxu0 0
  %717 = vmatpush2.bf16.msra.mxu0 0
  %718 = vmatprep.subr.bf16.mxu0 0
  %719 = vmatpush2.bf16.msra.mxu0 0
  %720 = vmatprep.subr.bf16.mxu0 0
  %721 = vmatpush2.bf16.msra.mxu0 0
  %722 = vmatprep.subr.bf16.mxu0 0
  %723 = vmatpush2.bf16.msra.mxu0 0
  %724 = vmatprep.subr.bf16.mxu0 0
  %725 = vmatpush2.bf16.msra.mxu0 0
  %726 = vmatprep.mubr.bf16.mxu0 0
  %727 = vmatmul.mubr.bf16.gmra.mxu0 %v622
  %v728 = vpop.f32.mrf.mxu0
  %v729 = vadd.f32 %v644, %v728
  %v730 = vpop.f32.mrf.mxu0
  %v731 = vpop.f32.mrf.mxu0
  %v732 = vpop.f32.mrf.mxu0
  %733 = vdwg.mxu0
  %734 = vst [vmem:[%s6] sm:$0xff] %v729
  // Predicated region
  $region58: #{rnn_forward.1} parent=0 // pred_check
    _
  $region59: #{rnn_forward.1} parent=0 // pred_check_branch
    %736 = sbr.rel (0) target = $region61
  $region60: #{rnn_forward.1} parent=0 // pred_region
    _
  $region61: #{rnn_forward.1} parent=0 // pred_fallthru
    _
  // Predicated region
  $region62: #{rnn_forward.1} parent=0 // pred_check
    _
  $region63: #{rnn_forward.1} parent=0 // pred_check_branch
    %738 = sbr.rel (0) target = $region65
  $region64: #{rnn_forward.1} parent=0 // pred_region
    _
  $region65: #{rnn_forward.1} parent=0 // pred_fallthru
    _

</llo_original>
